<compile_context>
chip_gen: v7x
topology: tpu7x:2x2x1
jax: 0.10.0
libtpu: 0.0.40
codegen_flags: <defaults>
</compile_context>

<pallas_src>
import functools

import jax
import jax.numpy as jnp
from jax.experimental import pallas as pl
from jax.experimental.pallas import tpu as pltpu


def _round_up(x, m):
    return (x + m - 1) // m * m


def patch_embed_kernel(x_ref, w_ref, b_ref, o_ref):
    # x_ref: (TM, K), w_ref: (K, Np), b_ref: (1, Np), o_ref: (TM, Np)
    # NOTE: default MXU precision (bf16 passes) is plenty at K=256 / 1e-4 tol;
    # pin precision=jax.lax.Precision.HIGHEST here for larger K or tighter tolerances.
    acc = jnp.dot(x_ref[...], w_ref[...], preferred_element_type=jnp.float32)
    acc = acc + b_ref[...]                       # broadcast bias over rows
    o_ref[...] = jnp.maximum(acc, 0.0).astype(o_ref.dtype)


@functools.partial(jax.jit, static_argnames=("patch_size", "compute_dtype"))
def preprocess3d(x, weight, bias, *, patch_size, compute_dtype=jnp.float32):
    """Equivalent of PreProcess3D.forward.

    x:      (B, C_in, T, H, W)            float32  (NCDHW, like PyTorch)
    weight: (dim, C_in, pt, ph, pw)       float32  (PyTorch Conv3d layout)
    bias:   (dim,)                        float32
    returns (B, T', H'*W', dim)           float32
    """
    pt = ph = pw = patch_size
    B, C, T, H, W = x.shape
    dim = weight.shape[0]
    Tp, Hp, Wp = T // pt, H // ph, W // pw
    K = C * pt * ph * pw
    M = B * Tp * Hp * Wp

    # ---- glue: extract non-overlapping patches -> (M, K) ----
    # XLA fuses reshape/transpose/reshape into one HBM->HBM copy (see TODO above).
    xr = x.reshape(B, C, Tp, pt, Hp, ph, Wp, pw)
    xr = xr.transpose(0, 2, 4, 6, 1, 3, 5, 7)     # (B, T', H', W', C, pt, ph, pw)
    x_mat = xr.reshape(M, K)

    # conv weight flattened to (K, dim); bias to (1, dim)
    w_mat = weight.reshape(dim, K).T
    b_mat = bias.reshape(1, dim)

    # ---- lane-dense output: pad N up to a multiple of 128 lanes ----
    Np = max(_round_up(dim, 128), 128)
    if Np != dim:
        w_mat = jnp.pad(w_mat, ((0, 0), (0, Np - dim)))
        b_mat = jnp.pad(b_mat, ((0, 0), (0, Np - dim)))

    # ---- row tiling: one block for small M, MXU-aligned 256-row tiles otherwise ----
    Mp = _round_up(M, 8)
    if Mp <= 512:
        TM = Mp                      # single grid step: no per-step pipeline overhead
    else:
        TM = 256                     # MXU row dim on v6e/v7x (128 also fine on v5e)
        Mp = _round_up(M, TM)
    if Mp != M:
        x_mat = jnp.pad(x_mat, ((0, Mp - M), (0, 0)))

    if compute_dtype != jnp.float32:
        x_mat = x_mat.astype(compute_dtype)
        w_mat = w_mat.astype(compute_dtype)

    num_tiles = Mp // TM

    # Weight / bias are grid-invariant: single-buffer them when the grid pipelines.
    if num_tiles > 1:
        w_spec = pl.BlockSpec((K, Np), lambda i: (0, 0), pipeline_mode=pl.Buffered(1))
        b_spec = pl.BlockSpec((1, Np), lambda i: (0, 0), pipeline_mode=pl.Buffered(1))
    else:
        w_spec = pl.BlockSpec((K, Np), lambda i: (0, 0))
        b_spec = pl.BlockSpec((1, Np), lambda i: (0, 0))

    out_mat = pl.pallas_call(
        patch_embed_kernel,
        out_shape=jax.ShapeDtypeStruct((Mp, Np), jnp.float32),
        grid_spec=pltpu.PrefetchScalarGridSpec(
            num_scalar_prefetch=0,
            grid=(num_tiles,),
            in_specs=[
                pl.BlockSpec((TM, K), lambda i: (i, 0)),
                w_spec,
                b_spec,
            ],
            out_specs=pl.BlockSpec((TM, Np), lambda i: (i, 0)),
        ),
        compiler_params=pltpu.CompilerParams(
            # Megacore sharding on the M axis only pays off once there are >=2
            # non-trivial grid steps; harmless for the single-step case.
            dimension_semantics=("parallel",)),
    )(x_mat, w_mat, b_mat)

    # ---- glue: drop padding, reshape to module output layout (B, T', H'*W', dim) ----
    out_mat = out_mat[:M, :dim]
    return out_mat.reshape(B, Tp, Hp * Wp, dim)


def _reference(x, weight, bias, patch_size):
    """Pure-JAX reference of the PyTorch forward (for sanity check)."""
    y = jax.lax.conv_general_dilated(
        x, weight,
        window_strides=(patch_size,) * 3,
        padding="VALID",
        dimension_numbers=("NCDHW", "OIDHW", "NCDHW"),
    ) + bias.reshape(1, -1, 1, 1, 1)
    y = jnp.maximum(y, 0.0)
    B, D, Tp, Hp, Wp = y.shape
    y = y.reshape(B, D, Tp, Hp * Wp)        # flatten(3)
    return y.transpose(0, 2, 3, 1)          # permute(0, 2, 3, 1)


if __name__ == "__main__":
    # config['model']: in_channels=4, dim=32, patch_size=4
    B, C_in, T, H, W = 2, 4, 8, 8, 8
    dim, patch = 32, 4

    key = jax.random.PRNGKey(0)
    kx, kw, kb = jax.random.split(key, 3)
    x = jax.random.normal(kx, (B, C_in, T, H, W), dtype=jnp.float32)
    # deterministic synthetic parameters (Conv3d weight/bias shapes)
    fan_in = C_in * patch ** 3
    bound = 1.0 / (fan_in ** 0.5)
    weight = jax.random.uniform(kw, (dim, C_in, patch, patch, patch),
                                minval=-bound, maxval=bound, dtype=jnp.float32)
    bias = jax.random.uniform(kb, (dim,), minval=-bound, maxval=bound,
                              dtype=jnp.float32)

    out = preprocess3d(x, weight, bias, patch_size=patch)
    out = jax.block_until_ready(out)

    ref = _reference(x, weight, bias, patch)
    assert out.shape == ref.shape == (B, T // patch, (H // patch) * (W // patch), dim)
    assert jnp.allclose(out, ref, atol=1e-4, rtol=1e-4)

    print("KERNEL_OK")
</pallas_src>

<mosaic_0001>
module attributes {stable_mosaic.version = 11 : i64} {
  func.func @patch_embed_kernel(%arg0: i32, %arg1: memref<16x256xf32, #tpu.memory_space<vmem>>, %arg2: memref<256x128xf32, #tpu.memory_space<vmem>>, %arg3: memref<1x128xf32, #tpu.memory_space<vmem>>, %arg4: memref<16x128xf32, #tpu.memory_space<vmem>>) attributes {dimension_semantics = [#tpu.dimension_semantics<parallel>], iteration_bounds = array<i64: 1>, scalar_prefetch = 0 : i64, scratch_operands = 0 : i64, tpu.core_type = #tpu.core_type<tc>, window_params = [{transform_indices = @transform_0, window_bounds = array<i64: 16, 256>}, {pipeline_mode = #tpu.pipeline_mode<synchronous>, transform_indices = @transform_1, window_bounds = array<i64: 256, 128>}, {pipeline_mode = #tpu.pipeline_mode<synchronous>, transform_indices = @transform_2, window_bounds = array<i64: 1, 128>}, {transform_indices = @transform_3, window_bounds = array<i64: 16, 128>}]} {
    %c0 = arith.constant 0 : index
    %c0_0 = arith.constant 0 : index
    %0 = vector.load %arg1[%c0, %c0_0] : memref<16x256xf32, #tpu.memory_space<vmem>>, vector<16x256xf32>
    %c0_1 = arith.constant 0 : index
    %c0_2 = arith.constant 0 : index
    %1 = vector.load %arg2[%c0_1, %c0_2] : memref<256x128xf32, #tpu.memory_space<vmem>>, vector<256x128xf32>
    %cst = arith.constant dense<0.000000e+00> : vector<16x128xf32>
    %2 = tpu.matmul %0, %1, %cst {dimension_numbers = #tpu.dot_dimension_numbers<[1], [0], [0], [1], [0, 0, 1, 1], [], []>} : vector<16x256xf32>, vector<256x128xf32>, vector<16x128xf32> -> vector<16x128xf32>
    %c0_3 = arith.constant 0 : index
    %c0_4 = arith.constant 0 : index
    %3 = vector.load %arg3[%c0_3, %c0_4] : memref<1x128xf32, #tpu.memory_space<vmem>>, vector<1x128xf32>
    %4 = vector.broadcast %3 : vector<1x128xf32> to vector<16x128xf32>
    %5 = arith.addf %2, %4 : vector<16x128xf32>
    %cst_5 = arith.constant 0.000000e+00 : f32
    %6 = vector.broadcast %cst_5 : f32 to vector<16x128xf32>
    %7 = arith.maximumf %5, %6 : vector<16x128xf32>
    %c0_6 = arith.constant 0 : index
    %c0_7 = arith.constant 0 : index
    %8 = vector.load %arg4[%c0_6, %c0_7] : memref<16x128xf32, #tpu.memory_space<vmem>>, vector<16x128xf32>
    tpu.vector_store %arg4[%c0_6, %c0_7], %7 {strides = array<i32>} : memref<16x128xf32, #tpu.memory_space<vmem>>, vector<16x128xf32>,
    return
  }
  func.func @transform_0(%arg0: i32) -> (i32, i32) {
    %c0_i32 = arith.constant 0 : i32
    %c0_i32_0 = arith.constant 0 : i32
    return %arg0, %c0_i32 : i32, i32
  }
  func.func @transform_1(%arg0: i32) -> (i32, i32) {
    %c0_i32 = arith.constant 0 : i32
    %c0_i32_0 = arith.constant 0 : i32
    %c0_i32_1 = arith.constant 0 : i32
    return %c0_i32, %c0_i32_0 : i32, i32
  }
  func.func @transform_2(%arg0: i32) -> (i32, i32) {
    %c0_i32 = arith.constant 0 : i32
    %c0_i32_0 = arith.constant 0 : i32
    %c0_i32_1 = arith.constant 0 : i32
    return %c0_i32, %c0_i32_0 : i32, i32
  }
  func.func @transform_3(%arg0: i32) -> (i32, i32) {
    %c0_i32 = arith.constant 0 : i32
    %c0_i32_0 = arith.constant 0 : i32
    return %arg0, %c0_i32 : i32, i32
  }
}

</mosaic_0001>

<llo_original>
// kernel: preprocess3d.1
$region0: #{preprocess3d.1}
  #allocation0 [shape = 'u32[]', space=smem, size = 0x4, offset = 0x4, fixed_abs, tag = 'smem constant byte address 0x4 - core index']
  #allocation1 [shape = 'u32[144,128]{1,0:T(1,128)}', space=vmem, size = 0x12000, scoped, tag = 'internal scratch']
  %s0 = inlined_call_operand.vmem [shape: f32[16,256], index: 0, kind: input, shape index: {}]
  %s1 = inlined_call_operand.vmem [shape: f32[256,128], index: 1, kind: input, shape index: {}]
  %s2 = inlined_call_operand.vmem [shape: f32[1,128], index: 2, kind: input, shape index: {}]
  %s3 = inlined_call_operand.hbm [shape: f32[16,128], index: 3, kind: output, shape index: {}]
  %s4 = sld [smem:[#allocation0]]
  $region22: #{preprocess3d.1} parent=0
    _
  %s6 = ssub.s32 1, %s4
  %s7 = scalar_select 0, %s6, %s4
  $region1: #{preprocess3d.1} parent=0
    #allocation2 [shape = 'u8[8192]{0}', space=vmem, size = 0x2000, scoped, tag = 'output window, operand 0, single buffered']
    #allocation3 [shape = 's32[1]{0}', space=sflag, size = 0x4, scoped, tag = 'scoped memory for preprocess3d.1']
    %8 = vsyncpa [#allocation3], 0
    // Predicated region
    $region2: #{preprocess3d.1} parent=1 // pred_check
      _
    $region3: #{preprocess3d.1} parent=1 // pred_check_branch
      %10 = sbr.rel (0) target = $region5
    $region4: #{preprocess3d.1} parent=1 // pred_region
      _
    $region5: #{preprocess3d.1} parent=1 // pred_fallthru
      _
    // Predicated region
    $region6: #{preprocess3d.1} parent=1 // pred_check
      _
    $region7: #{preprocess3d.1} parent=1 // pred_check_branch
      %12 = sbr.rel (0) target = $region9
    $region8: #{preprocess3d.1} parent=1 // pred_region
      _
    $region9: #{preprocess3d.1} parent=1 // pred_fallthru
      _
    // Predicated region
    $region10: #{preprocess3d.1} parent=1 // pred_check
      _
    $region11: #{preprocess3d.1} parent=1 // pred_check_branch
      %14 = sbr.rel (0) target = $region13
    $region12: #{preprocess3d.1} parent=1 // pred_region
      _
    $region13: #{preprocess3d.1} parent=1 // pred_fallthru
      _
    %v15 = vld [vmem:[%s0] sm:$0xff]
    %v16 = vld [vmem:[%s0 + $0x8] sm:$0xff]
    %v17 = vld [vmem:[%s0 + $0x10] sm:$0xff]
    %v18 = vld [vmem:[%s0 + $0x18] sm:$0xff]
    %v19 = vld [vmem:[%s1] sm:$0xff]
    %v20 = vld [vmem:[%s1 + $0x8] sm:$0xff]
    %v21 = vld [vmem:[%s1 + $0x10] sm:$0xff]
    %v22 = vld [vmem:[%s1 + $0x18] sm:$0xff]
    %v23 = vld [vmem:[%s1 + $0x20] sm:$0xff]
    %v24 = vld [vmem:[%s1 + $0x28] sm:$0xff]
    %v25 = vld [vmem:[%s1 + $0x30] sm:$0xff]
    %v26 = vld [vmem:[%s1 + $0x38] sm:$0xff]
    %v27 = vld [vmem:[%s1 + $0x40] sm:$0xff]
    %v28 = vld [vmem:[%s1 + $0x48] sm:$0xff]
    %v29 = vld [vmem:[%s1 + $0x50] sm:$0xff]
    %v30 = vld [vmem:[%s1 + $0x58] sm:$0xff]
    %v31 = vld [vmem:[%s1 + $0x60] sm:$0xff]
    %v32 = vld [vmem:[%s1 + $0x68] sm:$0xff]
    %v33 = vld [vmem:[%s1 + $0x70] sm:$0xff]
    %v34 = vld [vmem:[%s1 + $0x78] sm:$0xff]
    %v35 = vld [vmem:[%s1 + $0x80] sm:$0xff]
    %v36 = vld [vmem:[%s1 + $0x88] sm:$0xff]
    %v37 = vld [vmem:[%s1 + $0x90] sm:$0xff]
    %v38 = vld [vmem:[%s1 + $0x98] sm:$0xff]
    %v39 = vld [vmem:[%s1 + $0xa0] sm:$0xff]
    %v40 = vld [vmem:[%s1 + $0xa8] sm:$0xff]
    %v41 = vld [vmem:[%s1 + $0xb0] sm:$0xff]
    %v42 = vld [vmem:[%s1 + $0xb8] sm:$0xff]
    %v43 = vld [vmem:[%s1 + $0xc0] sm:$0xff]
    %v44 = vld [vmem:[%s1 + $0xc8] sm:$0xff]
    %v45 = vld [vmem:[%s1 + $0xd0] sm:$0xff]
    %v46 = vld [vmem:[%s1 + $0xd8] sm:$0xff]
    %v47 = vld [vmem:[%s1 + $0xe0] sm:$0xff]
    %v48 = vld [vmem:[%s1 + $0xe8] sm:$0xff]
    %v49 = vld [vmem:[%s1 + $0xf0] sm:$0xff]
    %v50 = vld [vmem:[%s1 + $0xf8] sm:$0xff]
    %v51 = vld [vmem:[%s2] sm:$0x1]
    %v53 = vlaneseq
    %v54 = vshrl.u32 %v53, 7
    %v55 = vsub.s32 0, %v54
    %v56 = vrot.slane %v51, %v55
    %58 = vmatprep.subr.mxu0 0.0
    %59 = vmatpush1.msra.mxu0 %v19
    %60 = vmatprep.subr.mxu0 0.0
    %61 = vmatpush1.msra.mxu0 %v20
    %62 = vmatprep.subr.mxu0 0.0
    %63 = vmatpush1.msra.mxu0 %v21
    %64 = vmatprep.subr.mxu0 0.0
    %65 = vmatpush1.msra.mxu0 %v22
    %66 = vmatprep.subr.mxu0 0.0
    %67 = vmatpush1.msra.mxu0 %v23
    %68 = vmatprep.subr.mxu0 0.0
    %69 = vmatpush1.msra.mxu0 %v24
    %70 = vmatprep.subr.mxu0 0.0
    %71 = vmatpush1.msra.mxu0 %v25
    %72 = vmatprep.subr.mxu0 0.0
    %73 = vmatpush1.msra.mxu0 %v26
    %74 = vmatprep.subr.mxu0 0.0
    %75 = vmatpush1.msra.mxu0 %v27
    %76 = vmatprep.subr.mxu0 0.0
    %77 = vmatpush1.msra.mxu0 %v28
    %78 = vmatprep.subr.mxu0 0.0
    %79 = vmatpush1.msra.mxu0 %v29
    %80 = vmatprep.subr.mxu0 0.0
    %81 = vmatpush1.msra.mxu0 %v30
    %82 = vmatprep.subr.mxu0 0.0
    %83 = vmatpush1.msra.mxu0 %v31
    %84 = vmatprep.subr.mxu0 0.0
    %85 = vmatpush1.msra.mxu0 %v32
    %86 = vmatprep.subr.mxu0 0.0
    %87 = vmatpush1.msra.mxu0 %v33
    %88 = vmatprep.subr.mxu0 0.0
    %89 = vmatpush1.msra.mxu0 %v34
    %90 = vmatprep.subr.mxu0 0.0
    %91 = vmatpush1.msra.mxu0 %v35
    %92 = vmatprep.subr.mxu0 0.0
    %93 = vmatpush1.msra.mxu0 %v36
    %94 = vmatprep.subr.mxu0 0.0
    %95 = vmatpush1.msra.mxu0 %v37
    %96 = vmatprep.subr.mxu0 0.0
    %97 = vmatpush1.msra.mxu0 %v38
    %98 = vmatprep.subr.mxu0 0.0
    %99 = vmatpush1.msra.mxu0 %v39
    %100 = vmatprep.subr.mxu0 0.0
    %101 = vmatpush1.msra.mxu0 %v40
    %102 = vmatprep.subr.mxu0 0.0
    %103 = vmatpush1.msra.mxu0 %v41
    %104 = vmatprep.subr.mxu0 0.0
    %105 = vmatpush1.msra.mxu0 %v42
    %106 = vmatprep.subr.mxu0 0.0
    %107 = vmatpush1.msra.mxu0 %v43
    %108 = vmatprep.subr.mxu0 0.0
    %109 = vmatpush1.msra.mxu0 %v44
    %110 = vmatprep.subr.mxu0 0.0
    %111 = vmatpush1.msra.mxu0 %v45
    %112 = vmatprep.subr.mxu0 0.0
    %113 = vmatpush1.msra.mxu0 %v46
    %114 = vmatprep.subr.mxu0 0.0
    %115 = vmatpush1.msra.mxu0 %v47
    %116 = vmatprep.subr.mxu0 0.0
    %117 = vmatpush1.msra.mxu0 %v48
    %118 = vmatprep.subr.mxu0 0.0
    %119 = vmatpush1.msra.mxu0 %v49
    %120 = vmatprep.subr.mxu0 0.0
    %121 = vmatpush1.msra.mxu0 %v50
    %122 = vmatprep.mubr.f32.mxu0 %v16
    %123 = vmatmul.mubr.f32.gmra.mrb[0].mxu0 %v15
    %v124 = vpop.f32.mrb[0].mxu0
    %v125 = vadd.f32 %v56, %v124
    %v126 = vpop.f32.mrb[0].mxu0
    %127 = vmatprep.mubr.f32.mxu0 %v18
    %128 = vmatmul.mubr.f32.gmra.mrb[0].mxu0 %v17
    %v129 = vpop.f32.mrb[0].mxu0
    %v130 = vadd.f32 %v56, %v129
    %v131 = vpop.f32.mrb[0].mxu0
    %132 = vdwg.mxu0
    %v133 = vmax.f32 %v125, 0.0
    %v134 = vmax.f32 %v130, 0.0
    %135 = vst [vmem:[#allocation2] sm:$0xff] %v133
    %136 = vst [vmem:[#allocation2 + $0x8] sm:$0xff] %v134
    // Predicated region
    $region14: #{preprocess3d.1} parent=1 // pred_check
      _
    $region15: #{preprocess3d.1} parent=1 // pred_check_branch
      %138 = sbr.rel (0) target = $region17
    $region16: #{preprocess3d.1} parent=1 // pred_region
      %s140 = ssub.s32 256, 256
      %141 = vsyncadd [#allocation3], %s140
      %s142 = sshll.u32 [#allocation2], 4
      %s143 = int_to_ptr.vmem [resolvable:$true] %s142
      %148 = dma.vmem_to_hbm [thread:$0]  %s143, 256, %s3, [#allocation3], 128, 128, 8
    $region17: #{preprocess3d.1} parent=1 // pred_fallthru
      _
    // Predicated region
    $region18: #{preprocess3d.1} parent=1 // pred_check
      _
    $region19: #{preprocess3d.1} parent=1 // pred_check_branch
      %150 = sbr.rel (0) target = $region21
    $region20: #{preprocess3d.1} parent=1 // pred_region
      %151 = dma.done [#allocation3], 256
    $region21: #{preprocess3d.1} parent=1 // pred_fallthru
      _
    %152 = vsyncpa [#allocation3], 1

</llo_original>
